<compile_context>
chip_gen: v5e
topology: v5e:2x2
jax: 0.10.0
libtpu: 0.0.40
codegen_flags: <defaults>
</compile_context>

<pallas_src>
import jax
import jax.numpy as jnp
from jax.experimental import pallas as pl
from jax.experimental.pallas import tpu as pltpu


def dqn_kernel(x_ref, w1_ref, b1_ref, w2_ref, b2_ref, w3_ref, b3_ref, o_ref):
    # Layer 1: (TB, K1p) @ (K1p, 128) -> f32 acc; bias + ReLU in f32.
    h1 = jnp.dot(x_ref[...], w1_ref[...], preferred_element_type=jnp.float32)
    h1 = jnp.maximum(h1 + b1_ref[...], 0.0)
    # Layer 2: (TB, 128) @ (128, 256) -> f32 acc; bias + ReLU in f32.
    h2 = jnp.dot(h1.astype(w2_ref.dtype), w2_ref[...],
                 preferred_element_type=jnp.float32)
    h2 = jnp.maximum(h2 + b2_ref[...], 0.0)
    # Layer 3: (TB, 256) @ (256, Np) -> f32 acc; lane-dense (128-padded) store.
    q = jnp.dot(h2.astype(w3_ref.dtype), w3_ref[...],
                preferred_element_type=jnp.float32)
    o_ref[...] = (q + b3_ref[...]).astype(o_ref.dtype)


def _round_up(n, m):
    return ((n + m - 1) // m) * m


def dqn_forward(x, params, *, batch_tile=256):
    """Fused MLP forward.  x: (B, D_in) float32.  Returns (B, D_out) float32."""
    w1, b1, w2, b2, w3, b3 = params
    B, d_in = x.shape
    h1_dim = w1.shape[1]          # 128
    h2_dim = w2.shape[1]          # 256
    d_out = w3.shape[1]

    # Lane-dense padding of the narrow feature dims (K of layer 1, N of layer 3).
    d_in_p = _round_up(max(d_in, 128), 128)
    d_out_p = _round_up(max(d_out, 128), 128)

    # Batch tile: multiple of 8 sublanes, capped at batch_tile; pad B to a
    # multiple of the tile so the grid divides evenly.
    tb = min(batch_tile, _round_up(B, 8))
    b_pad = _round_up(B, tb)
    grid = (b_pad // tb,)

    cdt = jnp.bfloat16  # MXU input dtype (f32 accumulation in-kernel)

    # Zero-padded, bf16-cast operands.  Padded x columns / w1 rows and padded
    # w3/b3 columns are zero, so padding never changes the math.
    x_p = jnp.zeros((b_pad, d_in_p), cdt).at[:B, :d_in].set(x.astype(cdt))
    w1_p = jnp.zeros((d_in_p, h1_dim), cdt).at[:d_in, :].set(w1.astype(cdt))
    w2_p = w2.astype(cdt)
    w3_p = jnp.zeros((h2_dim, d_out_p), cdt).at[:, :d_out].set(w3.astype(cdt))
    b1_p = b1.astype(jnp.float32)
    b2_p = b2.astype(jnp.float32)
    b3_p = jnp.zeros((1, d_out_p), jnp.float32).at[:, :d_out].set(
        b3.astype(jnp.float32))

    out = pl.pallas_call(
        dqn_kernel,
        out_shape=jax.ShapeDtypeStruct((b_pad, d_out_p), jnp.float32),
        grid=grid,
        in_specs=[
            # Activations: stream over the batch grid axis.
            pl.BlockSpec((tb, d_in_p), lambda i: (i, 0)),
            # Weights / biases: constant block index -> resident in VMEM.
            pl.BlockSpec((d_in_p, h1_dim), lambda i: (0, 0)),
            pl.BlockSpec((1, h1_dim), lambda i: (0, 0)),
            pl.BlockSpec((h1_dim, h2_dim), lambda i: (0, 0)),
            pl.BlockSpec((1, h2_dim), lambda i: (0, 0)),
            pl.BlockSpec((h2_dim, d_out_p), lambda i: (0, 0)),
            pl.BlockSpec((1, d_out_p), lambda i: (0, 0)),
        ],
        out_specs=pl.BlockSpec((tb, d_out_p), lambda i: (i, 0)),
        compiler_params=pltpu.CompilerParams(
            dimension_semantics=("parallel",)),
    )(x_p, w1_p, b1_p, w2_p, b2_p, w3_p, b3_p)

    # Slice padded batch rows and padded output lanes back off.
    return out[:B, :d_out]


def init_params(key, d_in, d_out):
    """Deterministic init (uniform, torch-Linear-style fan_in scaling)."""
    ks = jax.random.split(key, 6)

    def lin(kw, kb, fan_in, fan_out):
        bound = 1.0 / jnp.sqrt(fan_in)
        w = jax.random.uniform(kw, (fan_in, fan_out), jnp.float32, -bound, bound)
        b = jax.random.uniform(kb, (1, fan_out), jnp.float32, -bound, bound)
        return w, b

    w1, b1 = lin(ks[0], ks[1], d_in, 128)
    w2, b2 = lin(ks[2], ks[3], 128, 256)
    w3, b3 = lin(ks[4], ks[5], 256, d_out)
    return (w1, b1, w2, b2, w3, b3)


def dqn_reference(x, params):
    """Pure f32 reference matching the PyTorch module's forward."""
    w1, b1, w2, b2, w3, b3 = params
    h1 = jnp.maximum(x @ w1 + b1, 0.0)
    h2 = jnp.maximum(h1 @ w2 + b2, 0.0)
    return h2 @ w3 + b3


if __name__ == "__main__":
    key = jax.random.PRNGKey(0)
    k_x, k_p, k_x2 = jax.random.split(key, 3)

    D_IN, D_OUT = 32, 4  # input_dim=(32,), output_dim=4 actions
    params = init_params(k_p, D_IN, D_OUT)

    # Small inference-style batch (single grid step, tb=8).
    B = 8
    x = jax.random.normal(k_x, (B, D_IN), jnp.float32)
    out = jax.block_until_ready(dqn_forward(x, params))
    ref = dqn_reference(x, params)
    assert out.shape == (B, D_OUT)
    assert jnp.allclose(out, ref, atol=5e-2, rtol=5e-2), (
        float(jnp.max(jnp.abs(out - ref))))

    # Replay-sized batch that exercises the batch-tiled grid (pads 300 -> 512,
    # grid of 2 steps, non-trivial pipelining / parallel sharding).
    B2 = 300
    x2 = jax.random.normal(k_x2, (B2, D_IN), jnp.float32)
    out2 = jax.block_until_ready(dqn_forward(x2, params))
    ref2 = dqn_reference(x2, params)
    assert out2.shape == (B2, D_OUT)
    assert jnp.allclose(out2, ref2, atol=5e-2, rtol=5e-2), (
        float(jnp.max(jnp.abs(out2 - ref2))))

    print("KERNEL_OK")
</pallas_src>

<mosaic_0001>
module attributes {stable_mosaic.version = 11 : i64} {
  func.func @dqn_kernel(%arg0: i32, %arg1: memref<8x128xbf16, #tpu.memory_space<vmem>>, %arg2: memref<128x128xbf16, #tpu.memory_space<vmem>>, %arg3: memref<1x128xf32, #tpu.memory_space<vmem>>, %arg4: memref<128x256xbf16, #tpu.memory_space<vmem>>, %arg5: memref<1x256xf32, #tpu.memory_space<vmem>>, %arg6: memref<256x128xbf16, #tpu.memory_space<vmem>>, %arg7: memref<1x128xf32, #tpu.memory_space<vmem>>, %arg8: memref<8x128xf32, #tpu.memory_space<vmem>>) attributes {dimension_semantics = [#tpu.dimension_semantics<parallel>], iteration_bounds = array<i64: 1>, scalar_prefetch = 0 : i64, scratch_operands = 0 : i64, tpu.core_type = #tpu.core_type<tc>, window_params = [{transform_indices = @transform_0, window_bounds = array<i64: 8, 128>}, {pipeline_mode = #tpu.pipeline_mode<synchronous>, transform_indices = @transform_1, window_bounds = array<i64: 128, 128>}, {pipeline_mode = #tpu.pipeline_mode<synchronous>, transform_indices = @transform_2, window_bounds = array<i64: 1, 128>}, {pipeline_mode = #tpu.pipeline_mode<synchronous>, transform_indices = @transform_3, window_bounds = array<i64: 128, 256>}, {pipeline_mode = #tpu.pipeline_mode<synchronous>, transform_indices = @transform_4, window_bounds = array<i64: 1, 256>}, {pipeline_mode = #tpu.pipeline_mode<synchronous>, transform_indices = @transform_5, window_bounds = array<i64: 256, 128>}, {pipeline_mode = #tpu.pipeline_mode<synchronous>, transform_indices = @transform_6, window_bounds = array<i64: 1, 128>}, {transform_indices = @transform_7, window_bounds = array<i64: 8, 128>}]} {
    %c0 = arith.constant 0 : index
    %c0_0 = arith.constant 0 : index
    %0 = vector.load %arg1[%c0, %c0_0] : memref<8x128xbf16, #tpu.memory_space<vmem>>, vector<8x128xbf16>
    %c0_1 = arith.constant 0 : index
    %c0_2 = arith.constant 0 : index
    %1 = vector.load %arg2[%c0_1, %c0_2] : memref<128x128xbf16, #tpu.memory_space<vmem>>, vector<128x128xbf16>
    %cst = arith.constant dense<0.000000e+00> : vector<8x128xf32>
    %2 = tpu.matmul %0, %1, %cst {dimension_numbers = #tpu.dot_dimension_numbers<[1], [0], [0], [1], [0, 0, 1, 1], [], []>} : vector<8x128xbf16>, vector<128x128xbf16>, vector<8x128xf32> -> vector<8x128xf32>
    %c0_3 = arith.constant 0 : index
    %c0_4 = arith.constant 0 : index
    %3 = vector.load %arg3[%c0_3, %c0_4] : memref<1x128xf32, #tpu.memory_space<vmem>>, vector<1x128xf32>
    %4 = vector.broadcast %3 : vector<1x128xf32> to vector<8x128xf32>
    %5 = arith.addf %2, %4 : vector<8x128xf32>
    %cst_5 = arith.constant 0.000000e+00 : f32
    %6 = vector.broadcast %cst_5 : f32 to vector<8x128xf32>
    %7 = arith.maximumf %5, %6 : vector<8x128xf32>
    %8 = arith.truncf %7 : vector<8x128xf32> to vector<8x128xbf16>
    %c0_6 = arith.constant 0 : index
    %c0_7 = arith.constant 0 : index
    %9 = vector.load %arg4[%c0_6, %c0_7] : memref<128x256xbf16, #tpu.memory_space<vmem>>, vector<128x256xbf16>
    %cst_8 = arith.constant dense<0.000000e+00> : vector<8x256xf32>
    %10 = tpu.matmul %8, %9, %cst_8 {dimension_numbers = #tpu.dot_dimension_numbers<[1], [0], [0], [1], [0, 0, 1, 1], [], []>} : vector<8x128xbf16>, vector<128x256xbf16>, vector<8x256xf32> -> vector<8x256xf32>
    %c0_9 = arith.constant 0 : index
    %c0_10 = arith.constant 0 : index
    %11 = vector.load %arg5[%c0_9, %c0_10] : memref<1x256xf32, #tpu.memory_space<vmem>>, vector<1x256xf32>
    %12 = vector.broadcast %11 : vector<1x256xf32> to vector<8x256xf32>
    %13 = arith.addf %10, %12 : vector<8x256xf32>
    %cst_11 = arith.constant 0.000000e+00 : f32
    %14 = vector.broadcast %cst_11 : f32 to vector<8x256xf32>
    %15 = arith.maximumf %13, %14 : vector<8x256xf32>
    %16 = arith.truncf %15 : vector<8x256xf32> to vector<8x256xbf16>
    %c0_12 = arith.constant 0 : index
    %c0_13 = arith.constant 0 : index
    %17 = vector.load %arg6[%c0_12, %c0_13] : memref<256x128xbf16, #tpu.memory_space<vmem>>, vector<256x128xbf16>
    %cst_14 = arith.constant dense<0.000000e+00> : vector<8x128xf32>
    %18 = tpu.matmul %16, %17, %cst_14 {dimension_numbers = #tpu.dot_dimension_numbers<[1], [0], [0], [1], [0, 0, 1, 1], [], []>} : vector<8x256xbf16>, vector<256x128xbf16>, vector<8x128xf32> -> vector<8x128xf32>
    %c0_15 = arith.constant 0 : index
    %c0_16 = arith.constant 0 : index
    %19 = vector.load %arg7[%c0_15, %c0_16] : memref<1x128xf32, #tpu.memory_space<vmem>>, vector<1x128xf32>
    %20 = vector.broadcast %19 : vector<1x128xf32> to vector<8x128xf32>
    %21 = arith.addf %18, %20 : vector<8x128xf32>
    %c0_17 = arith.constant 0 : index
    %c0_18 = arith.constant 0 : index
    %22 = vector.load %arg8[%c0_17, %c0_18] : memref<8x128xf32, #tpu.memory_space<vmem>>, vector<8x128xf32>
    tpu.vector_store %arg8[%c0_17, %c0_18], %21 {strides = array<i32>} : memref<8x128xf32, #tpu.memory_space<vmem>>, vector<8x128xf32>,
    return
  }
  func.func @transform_0(%arg0: i32) -> (i32, i32) {
    %c0_i32 = arith.constant 0 : i32
    %c0_i32_0 = arith.constant 0 : i32
    return %arg0, %c0_i32 : i32, i32
  }
  func.func @transform_1(%arg0: i32) -> (i32, i32) {
    %c0_i32 = arith.constant 0 : i32
    %c0_i32_0 = arith.constant 0 : i32
    %c0_i32_1 = arith.constant 0 : i32
    return %c0_i32, %c0_i32_0 : i32, i32
  }
  func.func @transform_2(%arg0: i32) -> (i32, i32) {
    %c0_i32 = arith.constant 0 : i32
    %c0_i32_0 = arith.constant 0 : i32
    %c0_i32_1 = arith.constant 0 : i32
    return %c0_i32, %c0_i32_0 : i32, i32
  }
  func.func @transform_3(%arg0: i32) -> (i32, i32) {
    %c0_i32 = arith.constant 0 : i32
    %c0_i32_0 = arith.constant 0 : i32
    %c0_i32_1 = arith.constant 0 : i32
    return %c0_i32, %c0_i32_0 : i32, i32
  }
  func.func @transform_4(%arg0: i32) -> (i32, i32) {
    %c0_i32 = arith.constant 0 : i32
    %c0_i32_0 = arith.constant 0 : i32
    %c0_i32_1 = arith.constant 0 : i32
    return %c0_i32, %c0_i32_0 : i32, i32
  }
  func.func @transform_5(%arg0: i32) -> (i32, i32) {
    %c0_i32 = arith.constant 0 : i32
    %c0_i32_0 = arith.constant 0 : i32
    %c0_i32_1 = arith.constant 0 : i32
    return %c0_i32, %c0_i32_0 : i32, i32
  }
  func.func @transform_6(%arg0: i32) -> (i32, i32) {
    %c0_i32 = arith.constant 0 : i32
    %c0_i32_0 = arith.constant 0 : i32
    %c0_i32_1 = arith.constant 0 : i32
    return %c0_i32, %c0_i32_0 : i32, i32
  }
  func.func @transform_7(%arg0: i32) -> (i32, i32) {
    %c0_i32 = arith.constant 0 : i32
    %c0_i32_0 = arith.constant 0 : i32
    return %arg0, %c0_i32 : i32, i32
  }
}

</mosaic_0001>

<llo_original>
// kernel: tpu_custom_call.1
$region0: #{tpu_custom_call.1}
  #allocation0 [shape = 'u32[]', space=smem, size = 0x4, offset = 0x4, fixed_abs, tag = 'smem constant byte address 0x4 - core index']
  #allocation1 [shape = 'u32[72,128]{1,0:T(1,128)}', space=vmem, size = 0x9000, scoped, tag = 'internal scratch']
  %s0 = inlined_call_operand.hbm [shape: bf16[8,128], index: 0, kind: input, shape index: {}]
  %s1 = inlined_call_operand.hbm [shape: bf16[128,128], index: 1, kind: input, shape index: {}]
  %s2 = inlined_call_operand.vmem [shape: f32[1,128], index: 2, kind: input, shape index: {}]
  %s3 = inlined_call_operand.hbm [shape: bf16[128,256], index: 3, kind: input, shape index: {}]
  %s4 = inlined_call_operand.vmem [shape: f32[1,256], index: 4, kind: input, shape index: {}]
  %s5 = inlined_call_operand.hbm [shape: bf16[256,128], index: 5, kind: input, shape index: {}]
  %s6 = inlined_call_operand.vmem [shape: f32[1,128], index: 6, kind: input, shape index: {}]
  %s7 = inlined_call_operand.hbm [shape: f32[8,128], index: 7, kind: output, shape index: {}]
  %s8 = sld [smem:[#allocation0]]
  $region54: #{tpu_custom_call.1} parent=0
    _
  %s10 = ssub.s32 1, %s8
  %s11 = scalar_select 0, %s10, %s8
  $region1: #{tpu_custom_call.1} parent=0
    #allocation2 [shape = 'u8[2048]{0}', space=vmem, size = 0x800, scoped, tag = 'input window, operand 0, single buffered']
    #allocation3 [shape = 's32[1]{0}', space=sflag, size = 0x4, scoped, tag = 'scoped memory for tpu_custom_call.1']
    #allocation4 [shape = 's32[1]{0}', space=sflag, size = 0x4, scoped, tag = 'scoped memory for tpu_custom_call.1']
    #allocation5 [shape = 'u8[32768]{0}', space=vmem, size = 0x8000, scoped, tag = 'input window, operand 1, single buffered']
    #allocation6 [shape = 's32[1]{0}', space=sflag, size = 0x4, scoped, tag = 'scoped memory for tpu_custom_call.1']
    #allocation7 [shape = 'u8[65536]{0}', space=vmem, size = 0x10000, scoped, tag = 'input window, operand 3, single buffered']
    #allocation8 [shape = 'u8[65536]{0}', space=vmem, size = 0x10000, scoped, tag = 'input window, operand 5, single buffered']
    #allocation9 [shape = 's32[1]{0}', space=sflag, size = 0x4, scoped, tag = 'scoped memory for tpu_custom_call.1']
    #allocation10 [shape = 'u8[4096]{0}', space=vmem, size = 0x1000, scoped, tag = 'output window, operand 0, single buffered']
    %12 = vsyncpa [#allocation3], 0
    %13 = vsyncpa [#allocation6], 0
    %14 = vsyncpa [#allocation9], 0
    %15 = vsyncpa [#allocation4], 0
    // Predicated region
    $region2: #{tpu_custom_call.1} parent=1 // pred_check
      _
    $region3: #{tpu_custom_call.1} parent=1 // pred_check_branch
      %17 = sbr.rel (0) target = $region5
    $region4: #{tpu_custom_call.1} parent=1 // pred_region
      %19 = vsyncadd [#allocation3], 0
      %s21 = sshll.u32 %s0, 4
      %s22 = int_to_ptr.hbm [resolvable:$true] %s21
      %s23 = sshll.u32 [#allocation2], 4
      %s24 = int_to_ptr.vmem [resolvable:$true] %s23
      %26 = dma.hbm_to_vmem [thread:$0]  %s22, 64, %s24, [#allocation3]
    $region5: #{tpu_custom_call.1} parent=1 // pred_fallthru
      _
    // Predicated region
    $region6: #{tpu_custom_call.1} parent=1 // pred_check
      _
    $region7: #{tpu_custom_call.1} parent=1 // pred_check_branch
      %28 = sbr.rel (0) target = $region9
    $region8: #{tpu_custom_call.1} parent=1 // pred_region
      %30 = vsyncadd [#allocation6], 0
      %s31 = sshll.u32 %s1, 4
      %s32 = int_to_ptr.hbm [resolvable:$true] %s31
      %s33 = sshll.u32 [#allocation5], 4
      %s34 = int_to_ptr.vmem [resolvable:$true] %s33
      %39 = dma.hbm_to_vmem [thread:$0]  %s32, 1024, %s34, [#allocation6], 64, 64, 4
    $region9: #{tpu_custom_call.1} parent=1 // pred_fallthru
      _
    // Predicated region
    $region10: #{tpu_custom_call.1} parent=1 // pred_check
      _
    $region11: #{tpu_custom_call.1} parent=1 // pred_check_branch
      %41 = sbr.rel (0) target = $region13
    $region12: #{tpu_custom_call.1} parent=1 // pred_region
      _
    $region13: #{tpu_custom_call.1} parent=1 // pred_fallthru
      _
    // Predicated region
    $region14: #{tpu_custom_call.1} parent=1 // pred_check
      _
    $region15: #{tpu_custom_call.1} parent=1 // pred_check_branch
      %43 = sbr.rel (0) target = $region17
    $region16: #{tpu_custom_call.1} parent=1 // pred_region
      %45 = vsyncadd [#allocation6], 0
      %s46 = sshll.u32 %s3, 4
      %s47 = int_to_ptr.hbm [resolvable:$true] %s46
      %s48 = sshll.u32 [#allocation7], 4
      %s49 = int_to_ptr.vmem [resolvable:$true] %s48
      %54 = dma.hbm_to_vmem [thread:$0]  %s47, 2048, %s49, [#allocation6], 128, 128, 8
    $region17: #{tpu_custom_call.1} parent=1 // pred_fallthru
      _
    // Predicated region
    $region18: #{tpu_custom_call.1} parent=1 // pred_check
      _
    $region19: #{tpu_custom_call.1} parent=1 // pred_check_branch
      %56 = sbr.rel (0) target = $region21
    $region20: #{tpu_custom_call.1} parent=1 // pred_region
      _
    $region21: #{tpu_custom_call.1} parent=1 // pred_fallthru
      _
    // Predicated region
    $region22: #{tpu_custom_call.1} parent=1 // pred_check
      _
    $region23: #{tpu_custom_call.1} parent=1 // pred_check_branch
      %58 = sbr.rel (0) target = $region25
    $region24: #{tpu_custom_call.1} parent=1 // pred_region
      %60 = vsyncadd [#allocation9], 0
      %s61 = sshll.u32 %s5, 4
      %s62 = int_to_ptr.hbm [resolvable:$true] %s61
      %s63 = sshll.u32 [#allocation8], 4
      %s64 = int_to_ptr.vmem [resolvable:$true] %s63
      %69 = dma.hbm_to_vmem [thread:$0]  %s62, 2048, %s64, [#allocation9], 64, 64, 4
    $region25: #{tpu_custom_call.1} parent=1 // pred_fallthru
      _
    // Predicated region
    $region26: #{tpu_custom_call.1} parent=1 // pred_check
      _
    $region27: #{tpu_custom_call.1} parent=1 // pred_check_branch
      %71 = sbr.rel (0) target = $region29
    $region28: #{tpu_custom_call.1} parent=1 // pred_region
      _
    $region29: #{tpu_custom_call.1} parent=1 // pred_fallthru
      _
    // Predicated region
    $region30: #{tpu_custom_call.1} parent=1 // pred_check
      _
    $region31: #{tpu_custom_call.1} parent=1 // pred_check_branch
      %73 = sbr.rel (0) target = $region33
    $region32: #{tpu_custom_call.1} parent=1 // pred_region
      %75 = dma.done [#allocation3], 64
    $region33: #{tpu_custom_call.1} parent=1 // pred_fallthru
      _
    // Predicated region
    $region34: #{tpu_custom_call.1} parent=1 // pred_check
      _
    $region35: #{tpu_custom_call.1} parent=1 // pred_check_branch
      %77 = sbr.rel (0) target = $region37
    $region36: #{tpu_custom_call.1} parent=1 // pred_region
      %79 = dma.done [#allocation6], 1024
    $region37: #{tpu_custom_call.1} parent=1 // pred_fallthru
      _
    // Predicated region
    $region38: #{tpu_custom_call.1} parent=1 // pred_check
      _
    $region39: #{tpu_custom_call.1} parent=1 // pred_check_branch
      %81 = sbr.rel (0) target = $region41
    $region40: #{tpu_custom_call.1} parent=1 // pred_region
      %83 = dma.done [#allocation6], 2048
    $region41: #{tpu_custom_call.1} parent=1 // pred_fallthru
      _
    // Predicated region
    $region42: #{tpu_custom_call.1} parent=1 // pred_check
      _
    $region43: #{tpu_custom_call.1} parent=1 // pred_check_branch
      %85 = sbr.rel (0) target = $region45
    $region44: #{tpu_custom_call.1} parent=1 // pred_region
      %87 = dma.done [#allocation9], 2048
    $region45: #{tpu_custom_call.1} parent=1 // pred_fallthru
      _
    %v88 = vld [vmem:[#allocation2] sm:$0xf]
    %v89 = vld [vmem:[#allocation5] sm:$0xf]
    %v90 = vld [vmem:[#allocation5 + $0x4] sm:$0xf]
    %v91 = vld [vmem:[#allocation5 + $0x8] sm:$0xf]
    %v92 = vld [vmem:[#allocation5 + $0xc] sm:$0xf]
    %v93 = vld [vmem:[#allocation5 + $0x10] sm:$0xf]
    %v94 = vld [vmem:[#allocation5 + $0x14] sm:$0xf]
    %v95 = vld [vmem:[#allocation5 + $0x18] sm:$0xf]
    %v96 = vld [vmem:[#allocation5 + $0x1c] sm:$0xf]
    %v97 = vld [vmem:[#allocation5 + $0x20] sm:$0xf]
    %v98 = vld [vmem:[#allocation5 + $0x24] sm:$0xf]
    %v99 = vld [vmem:[#allocation5 + $0x28] sm:$0xf]
    %v100 = vld [vmem:[#allocation5 + $0x2c] sm:$0xf]
    %v101 = vld [vmem:[#allocation5 + $0x30] sm:$0xf]
    %v102 = vld [vmem:[#allocation5 + $0x34] sm:$0xf]
    %v103 = vld [vmem:[#allocation5 + $0x38] sm:$0xf]
    %v104 = vld [vmem:[#allocation5 + $0x3c] sm:$0xf]
    %v105 = vld [vmem:[%s2] sm:$0x1]
    %v107 = vperm.slane %v105, 0
    %v125 = vunpack.c.l.b16 %v89
    %v126 = vunpack.c.l.b16 %v90
    %v127 = vunpack.c.l.b16 %v91
    %v128 = vunpack.c.l.b16 %v92
    %v129 = vunpack.c.l.b16 %v93
    %v130 = vunpack.c.l.b16 %v94
    %v131 = vunpack.c.l.b16 %v95
    %v132 = vunpack.c.l.b16 %v96
    %v133 = vunpack.c.l.b16 %v97
    %v134 = vunpack.c.l.b16 %v98
    %v135 = vunpack.c.l.b16 %v99
    %v136 = vunpack.c.l.b16 %v100
    %v137 = vunpack.c.l.b16 %v101
    %v138 = vunpack.c.l.b16 %v102
    %v139 = vunpack.c.l.b16 %v103
    %v140 = vunpack.c.l.b16 %v104
    %v141 = vpack.c.b16 %v126, %v125
    %v142 = vpack.c.b16 %v128, %v127
    %v143 = vpack.c.b16 %v130, %v129
    %v144 = vpack.c.b16 %v132, %v131
    %v145 = vpack.c.b16 %v134, %v133
    %v146 = vpack.c.b16 %v136, %v135
    %v147 = vpack.c.b16 %v138, %v137
    %v148 = vpack.c.b16 %v140, %v139
    %157 = vmatpush.bf16.msra.mxu0 %v148
    %158 = vmatpush.bf16.msra.mxu0 %v147
    %159 = vmatpush.bf16.msra.mxu0 %v146
    %160 = vmatpush.bf16.msra.mxu0 %v145
    %161 = vmatpush.bf16.msra.mxu0 %v144
    %162 = vmatpush.bf16.msra.mxu0 %v143
    %163 = vmatpush.bf16.msra.mxu0 %v142
    %164 = vmatpush.bf16.msra.mxu0 %v141
    %165 = vmatmul.bf16.gmra.mxu0 %v88
    %v166 = vpop.f32.mrf.mxu0
    %v167 = vadd.f32 %v107, %v166
    %v168 = vpop.f32.mrf.mxu0
    %169 = vdwg.mxu0
    %v170 = vmax.f32 %v167, 0.0
    %v171 = vpack.c.bf16 %v170, %v170
    %v172 = vld [vmem:[#allocation7] sm:$0xff]
    %v173 = vld [vmem:[#allocation7 + $0x8] sm:$0xff]
    %v174 = vld [vmem:[#allocation7 + $0x10] sm:$0xff]
    %v175 = vld [vmem:[#allocation7 + $0x18] sm:$0xff]
    %v176 = vld [vmem:[#allocation7 + $0x20] sm:$0xff]
    %v177 = vld [vmem:[#allocation7 + $0x28] sm:$0xff]
    %v178 = vld [vmem:[#allocation7 + $0x30] sm:$0xff]
    %v179 = vld [vmem:[#allocation7 + $0x38] sm:$0xff]
    %v180 = vld [vmem:[#allocation7 + $0x40] sm:$0xff]
    %v181 = vld [vmem:[#allocation7 + $0x48] sm:$0xff]
    %v182 = vld [vmem:[#allocation7 + $0x50] sm:$0xff]
    %v183 = vld [vmem:[#allocation7 + $0x58] sm:$0xff]
    %v184 = vld [vmem:[#allocation7 + $0x60] sm:$0xff]
    %v185 = vld [vmem:[#allocation7 + $0x68] sm:$0xff]
    %v186 = vld [vmem:[#allocation7 + $0x70] sm:$0xff]
    %v187 = vld [vmem:[#allocation7 + $0x78] sm:$0xff]
    %v188 = vld [vmem:[%s4] sm:$0x3]
    %v190 = vperm.slane %v188, 0
    %v191 = vperm.slane %v188, 1
    %v210 = vunpack.c.l.b16 %v172
    %v211 = vunpack.c.h.b16 %v172
    %v212 = vunpack.c.l.b16 %v173
    %v213 = vunpack.c.h.b16 %v173
    %v214 = vunpack.c.l.b16 %v174
    %v215 = vunpack.c.h.b16 %v174
    %v216 = vunpack.c.l.b16 %v175
    %v217 = vunpack.c.h.b16 %v175
    %v218 = vunpack.c.l.b16 %v176
    %v219 = vunpack.c.h.b16 %v176
    %v220 = vunpack.c.l.b16 %v177
    %v221 = vunpack.c.h.b16 %v177
    %v222 = vunpack.c.l.b16 %v178
    %v223 = vunpack.c.h.b16 %v178
    %v224 = vunpack.c.l.b16 %v179
    %v225 = vunpack.c.h.b16 %v179
    %v226 = vunpack.c.l.b16 %v180
    %v227 = vunpack.c.h.b16 %v180
    %v228 = vunpack.c.l.b16 %v181
    %v229 = vunpack.c.h.b16 %v181
    %v230 = vunpack.c.l.b16 %v182
    %v231 = vunpack.c.h.b16 %v182
    %v232 = vunpack.c.l.b16 %v183
    %v233 = vunpack.c.h.b16 %v183
    %v234 = vunpack.c.l.b16 %v184
    %v235 = vunpack.c.h.b16 %v184
    %v236 = vunpack.c.l.b16 %v185
    %v237 = vunpack.c.h.b16 %v185
    %v238 = vunpack.c.l.b16 %v186
    %v239 = vunpack.c.h.b16 %v186
    %v240 = vunpack.c.l.b16 %v187
    %v241 = vunpack.c.h.b16 %v187
    %v242 = vpack.c.b16 %v212, %v210
    %v243 = vpack.c.b16 %v213, %v211
    %v244 = vpack.c.b16 %v216, %v214
    %v245 = vpack.c.b16 %v217, %v215
    %v246 = vpack.c.b16 %v220, %v218
    %v247 = vpack.c.b16 %v221, %v219
    %v248 = vpack.c.b16 %v224, %v222
    %v249 = vpack.c.b16 %v225, %v223
    %v250 = vpack.c.b16 %v228, %v226
    %v251 = vpack.c.b16 %v229, %v227
    %v252 = vpack.c.b16 %v232, %v230
    %v253 = vpack.c.b16 %v233, %v231
    %v254 = vpack.c.b16 %v236, %v234
    %v255 = vpack.c.b16 %v237, %v235
    %v256 = vpack.c.b16 %v240, %v238
    %v257 = vpack.c.b16 %v241, %v239
    %274 = vmatpush.bf16.msra.mxu0 %v256
    %275 = vmatpush.bf16.msra.mxu0 %v254
    %276 = vmatpush.bf16.msra.mxu0 %v252
    %277 = vmatpush.bf16.msra.mxu0 %v250
    %278 = vmatpush.bf16.msra.mxu0 %v248
    %279 = vmatpush.bf16.msra.mxu0 %v246
    %280 = vmatpush.bf16.msra.mxu0 %v244
    %281 = vmatpush.bf16.msra.mxu0 %v242
    %282 = vmatmul.bf16.gmra.mxu0 %v171
    %v283 = vpop.f32.mrf.mxu0
    %v284 = vadd.f32 %v190, %v283
    %v285 = vpop.f32.mrf.mxu0
    %286 = vdwg.mxu0
    %287 = vmatpush.bf16.msra.mxu0 %v257
    %288 = vmatpush.bf16.msra.mxu0 %v255
    %289 = vmatpush.bf16.msra.mxu0 %v253
    %290 = vmatpush.bf16.msra.mxu0 %v251
    %291 = vmatpush.bf16.msra.mxu0 %v249
    %292 = vmatpush.bf16.msra.mxu0 %v247
    %293 = vmatpush.bf16.msra.mxu0 %v245
    %294 = vmatpush.bf16.msra.mxu0 %v243
    %295 = vmatmul.bf16.gmra.mxu0 %v171
    %v296 = vpop.f32.mrf.mxu0
    %v297 = vadd.f32 %v191, %v296
    %v298 = vpop.f32.mrf.mxu0
    %299 = vdwg.mxu0
    %v300 = vmax.f32 %v284, 0.0
    %v301 = vmax.f32 %v297, 0.0
    %v302 = vpack.c.bf16 %v300, %v300
    %v303 = vpack.c.bf16 %v301, %v301
    %v304 = vld [vmem:[#allocation8] sm:$0xf]
    %v305 = vld [vmem:[#allocation8 + $0x4] sm:$0xf]
    %v306 = vld [vmem:[#allocation8 + $0x8] sm:$0xf]
    %v307 = vld [vmem:[#allocation8 + $0xc] sm:$0xf]
    %v308 = vld [vmem:[#allocation8 + $0x10] sm:$0xf]
    %v309 = vld [vmem:[#allocation8 + $0x14] sm:$0xf]
    %v310 = vld [vmem:[#allocation8 + $0x18] sm:$0xf]
    %v311 = vld [vmem:[#allocation8 + $0x1c] sm:$0xf]
    %v312 = vld [vmem:[#allocation8 + $0x20] sm:$0xf]
    %v313 = vld [vmem:[#allocation8 + $0x24] sm:$0xf]
    %v314 = vld [vmem:[#allocation8 + $0x28] sm:$0xf]
    %v315 = vld [vmem:[#allocation8 + $0x2c] sm:$0xf]
    %v316 = vld [vmem:[#allocation8 + $0x30] sm:$0xf]
    %v317 = vld [vmem:[#allocation8 + $0x34] sm:$0xf]
    %v318 = vld [vmem:[#allocation8 + $0x38] sm:$0xf]
    %v319 = vld [vmem:[#allocation8 + $0x3c] sm:$0xf]
    %v320 = vld [vmem:[#allocation8 + $0x40] sm:$0xf]
    %v321 = vld [vmem:[#allocation8 + $0x44] sm:$0xf]
    %v322 = vld [vmem:[#allocation8 + $0x48] sm:$0xf]
    %v323 = vld [vmem:[#allocation8 + $0x4c] sm:$0xf]
    %v324 = vld [vmem:[#allocation8 + $0x50] sm:$0xf]
    %v325 = vld [vmem:[#allocation8 + $0x54] sm:$0xf]
    %v326 = vld [vmem:[#allocation8 + $0x58] sm:$0xf]
    %v327 = vld [vmem:[#allocation8 + $0x5c] sm:$0xf]
    %v328 = vld [vmem:[#allocation8 + $0x60] sm:$0xf]
    %v329 = vld [vmem:[#allocation8 + $0x64] sm:$0xf]
    %v330 = vld [vmem:[#allocation8 + $0x68] sm:$0xf]
    %v331 = vld [vmem:[#allocation8 + $0x6c] sm:$0xf]
    %v332 = vld [vmem:[#allocation8 + $0x70] sm:$0xf]
    %v333 = vld [vmem:[#allocation8 + $0x74] sm:$0xf]
    %v334 = vld [vmem:[#allocation8 + $0x78] sm:$0xf]
    %v335 = vld [vmem:[#allocation8 + $0x7c] sm:$0xf]
    %v336 = vld [vmem:[%s6] sm:$0x1]
    %v338 = vperm.slane %v336, 0
    %v372 = vunpack.c.l.b16 %v304
    %v373 = vunpack.c.l.b16 %v305
    %v374 = vunpack.c.l.b16 %v306
    %v375 = vunpack.c.l.b16 %v307
    %v376 = vunpack.c.l.b16 %v308
    %v377 = vunpack.c.l.b16 %v309
    %v378 = vunpack.c.l.b16 %v310
    %v379 = vunpack.c.l.b16 %v311
    %v380 = vunpack.c.l.b16 %v312
    %v381 = vunpack.c.l.b16 %v313
    %v382 = vunpack.c.l.b16 %v314
    %v383 = vunpack.c.l.b16 %v315
    %v384 = vunpack.c.l.b16 %v316
    %v385 = vunpack.c.l.b16 %v317
    %v386 = vunpack.c.l.b16 %v318
    %v387 = vunpack.c.l.b16 %v319
    %v388 = vunpack.c.l.b16 %v320
    %v389 = vunpack.c.l.b16 %v321
    %v390 = vunpack.c.l.b16 %v322
    %v391 = vunpack.c.l.b16 %v323
    %v392 = vunpack.c.l.b16 %v324
    %v393 = vunpack.c.l.b16 %v325
    %v394 = vunpack.c.l.b16 %v326
    %v395 = vunpack.c.l.b16 %v327
    %v396 = vunpack.c.l.b16 %v328
    %v397 = vunpack.c.l.b16 %v329
    %v398 = vunpack.c.l.b16 %v330
    %v399 = vunpack.c.l.b16 %v331
    %v400 = vunpack.c.l.b16 %v332
    %v401 = vunpack.c.l.b16 %v333
    %v402 = vunpack.c.l.b16 %v334
    %v403 = vunpack.c.l.b16 %v335
    %v404 = vpack.c.b16 %v373, %v372
    %v405 = vpack.c.b16 %v375, %v374
    %v406 = vpack.c.b16 %v377, %v376
    %v407 = vpack.c.b16 %v379, %v378
    %v408 = vpack.c.b16 %v381, %v380
    %v409 = vpack.c.b16 %v383, %v382
    %v410 = vpack.c.b16 %v385, %v384
    %v411 = vpack.c.b16 %v387, %v386
    %v412 = vpack.c.b16 %v389, %v388
    %v413 = vpack.c.b16 %v391, %v390
    %v414 = vpack.c.b16 %v393, %v392
    %v415 = vpack.c.b16 %v395, %v394
    %v416 = vpack.c.b16 %v397, %v396
    %v417 = vpack.c.b16 %v399, %v398
    %v418 = vpack.c.b16 %v401, %v400
    %v419 = vpack.c.b16 %v403, %v402
    %436 = vmatpush.bf16.msra.mxu0 %v411
    %437 = vmatpush.bf16.msra.mxu0 %v410
    %438 = vmatpush.bf16.msra.mxu0 %v409
    %439 = vmatpush.bf16.msra.mxu0 %v408
    %440 = vmatpush.bf16.msra.mxu0 %v407
    %441 = vmatpush.bf16.msra.mxu0 %v406
    %442 = vmatpush.bf16.msra.mxu0 %v405
    %443 = vmatpush.bf16.msra.mxu0 %v404
    %444 = vmatmul.bf16.gmra.mxu0 %v302
    %v445 = vpop.f32.mrf.mxu0
    %v446 = vadd.f32 %v338, %v445
    %v447 = vpop.f32.mrf.mxu0
    %448 = vdwg.mxu0
    %449 = vmatpush.bf16.msra.mxu0 %v419
    %450 = vmatpush.bf16.msra.mxu0 %v418
    %451 = vmatpush.bf16.msra.mxu0 %v417
    %452 = vmatpush.bf16.msra.mxu0 %v416
    %453 = vmatpush.bf16.msra.mxu0 %v415
    %454 = vmatpush.bf16.msra.mxu0 %v414
    %455 = vmatpush.bf16.msra.mxu0 %v413
    %456 = vmatpush.bf16.msra.mxu0 %v412
    %457 = vmatmul.bf16.gmra.mxu0 %v303
    %v458 = vpop.f32.mrf.mxu0
    %v459 = vadd.f32 %v446, %v458
    %v460 = vpop.f32.mrf.mxu0
    %461 = vdwg.mxu0
    %462 = vst [vmem:[#allocation10] sm:$0xff] %v459
    // Predicated region
    $region46: #{tpu_custom_call.1} parent=1 // pred_check
      _
    $region47: #{tpu_custom_call.1} parent=1 // pred_check_branch
      %464 = sbr.rel (0) target = $region49
    $region48: #{tpu_custom_call.1} parent=1 // pred_region
      %466 = vsyncadd [#allocation4], 0
      %s468 = sshll.u32 [#allocation10], 4
      %s469 = int_to_ptr.vmem [resolvable:$true] %s468
      %s470 = sshll.u32 %s7, 4
      %s471 = int_to_ptr.hbm [resolvable:$true] %s470
      %473 = dma.vmem_to_hbm [thread:$0]  %s469, 128, %s471, [#allocation4]
    $region49: #{tpu_custom_call.1} parent=1 // pred_fallthru
      _
    // Predicated region
    $region50: #{tpu_custom_call.1} parent=1 // pred_check
      _
    $region51: #{tpu_custom_call.1} parent=1 // pred_check_branch
      %475 = sbr.rel (0) target = $region53
    $region52: #{tpu_custom_call.1} parent=1 // pred_region
      %477 = dma.done [#allocation4], 128
    $region53: #{tpu_custom_call.1} parent=1 // pred_fallthru
      _
    %478 = vsyncpa [#allocation3], 1
    %479 = vsyncpa [#allocation6], 1
    %480 = vsyncpa [#allocation9], 1
    %481 = vsyncpa [#allocation4], 1

</llo_original>
